<compile_context>
chip_gen: v7x
topology: tpu7x:2x2x1
jax: 0.10.0
libtpu: 0.0.40
codegen_flags: <defaults>
</compile_context>

<pallas_src>
import functools

import jax
import jax.numpy as jnp
from jax.experimental import pallas as pl
from jax.experimental.pallas import tpu as pltpu


def _round_up(x, m):
    return (x + m - 1) // m * m


def _cdiv(a, b):
    return (a + b - 1) // b


def _choose_tiles(B, tb_max=4096):
    """Balanced batch tiling: TB multiple of 8, >=2 steps when B > 8 rows."""
    B8 = _round_up(max(B, 1), 8)
    n_tiles = _cdiv(B8, tb_max)
    if B8 > 8:
        n_tiles = max(n_tiles, 2)   # let v7x's 2 TensorCores both get work
    TB = _round_up(_cdiv(B8, n_tiles), 8)
    n_tiles = _cdiv(B8, TB)
    B_pad = TB * n_tiles
    return TB, n_tiles, B_pad


def _dueling_kernel(x_ref, w1_ref, b1_ref, w2_ref, b2_ref, wh_ref, bh_ref,
                    out_ref):
    # In-kernel bf16 cast of the activation (MXU operand); no wrapper-side cast.
    x = x_ref[...].astype(w1_ref.dtype)

    # fc1: bf16 MXU matmul, f32 accumulate; bias + ReLU in f32 on the VPU.
    h1 = jnp.dot(x, w1_ref[...],
                 preferred_element_type=jnp.float32) + b1_ref[...]
    h1 = jnp.maximum(h1, 0.0)

    # fc2: same pattern.
    h2 = jnp.dot(h1.astype(w2_ref.dtype), w2_ref[...],
                 preferred_element_type=jnp.float32) + b2_ref[...]
    h2 = jnp.maximum(h2, 0.0)

    # Fused V/A head: single matmul into a 128-lane-padded output slab
    # (columns: [V | A | zero padding]) -> unmasked full-width stores.
    out_ref[...] = (jnp.dot(h2.astype(wh_ref.dtype), wh_ref[...],
                            preferred_element_type=jnp.float32) + bh_ref[...])


@functools.partial(jax.jit, static_argnames=("n_actions",))
def dueling_forward(state, packed_params, *, n_actions):
    """Runs the dueling DQN forward pass; returns (V, A) exactly like the module."""
    w1, b1, w2, b2, wh, bh = packed_params
    B, D = state.shape
    L1 = w1.shape[1]
    L2 = w2.shape[1]
    head_out = wh.shape[1]  # 128-lane padded head width

    TB, n_tiles, B_pad = _choose_tiles(B)

    x = state
    if B_pad != B:
        x = jnp.pad(x, ((0, B_pad - B), (0, 0)))

    const = lambda shape: pl.BlockSpec(shape, lambda i: (0,) * len(shape))

    weight_bytes = sum(int(t.size) * t.dtype.itemsize
                       for t in (w1, b1, w2, b2, wh, bh))
    cost = pl.CostEstimate(
        flops=2 * B_pad * (D * L1 + L1 * L2 + L2 * head_out),
        transcendentals=0,
        bytes_accessed=B_pad * D * 4 + weight_bytes + B_pad * head_out * 4,
    )

    out = pl.pallas_call(
        _dueling_kernel,
        out_shape=jax.ShapeDtypeStruct((B_pad, head_out), jnp.float32),
        grid=(n_tiles,),
        in_specs=[
            pl.BlockSpec((TB, D), lambda i: (i, 0)),  # state tile (pipelined)
            const(w1.shape), const(b1.shape),         # weights/biases resident:
            const(w2.shape), const(b2.shape),         # constant block index =>
            const(wh.shape), const(bh.shape),         # no re-DMA across steps
        ],
        out_specs=pl.BlockSpec((TB, head_out), lambda i: (i, 0)),
        compiler_params=pltpu.CompilerParams(
            dimension_semantics=("parallel",),        # shard batch on v7x's 2 TCs
            # TB capped at 4096 keeps double-buffered tiles (<~5 MiB) well under
            # the 32 MiB scoped-VMEM default on all generations; no explicit
            # vmem_limit_bytes needed unless TB is pushed past ~8192.
        ),
        cost_estimate=cost,
    )(x, w1, b1, w2, b2, wh, bh)

    V = out[:B, :1]
    A = out[:B, 1:1 + n_actions]
    return V, A


def init_params(key, input_dim, l1, l2, n_actions):
    """PyTorch-style uniform +-1/sqrt(fan_in) init.

    Weights stored as [in, out] (transposed vs. nn.Linear.weight); biases as
    [1, out] so they broadcast over the batch.
    """
    def linear(key, fan_in, fan_out):
        kw, kb = jax.random.split(key)
        bound = 1.0 / jnp.sqrt(jnp.asarray(fan_in, jnp.float32))
        w = jax.random.uniform(kw, (fan_in, fan_out), jnp.float32, -bound, bound)
        b = jax.random.uniform(kb, (1, fan_out), jnp.float32, -bound, bound)
        return w, b

    k1, k2, kv, ka = jax.random.split(key, 4)
    w1, b1 = linear(k1, input_dim, l1)
    w2, b2 = linear(k2, l1, l2)
    wv, bv = linear(kv, l2, 1)
    wa, ba = linear(ka, l2, n_actions)
    return (w1, b1, w2, b2, wv, bv, wa, ba)


def pack_params(w1, b1, w2, b2, wv, bv, wa, ba, compute_dtype=jnp.bfloat16):
    """Fuse V/A heads into one lane-padded weight and cast matmul weights to bf16."""
    n_actions = wa.shape[1]
    head_cols = 1 + n_actions
    head_out = _round_up(max(head_cols, 128), 128)
    wh = jnp.pad(jnp.concatenate([wv, wa], axis=1),
                 ((0, 0), (0, head_out - head_cols)))
    bh = jnp.pad(jnp.concatenate([bv, ba], axis=1),
                 ((0, 0), (0, head_out - head_cols)))
    return (w1.astype(compute_dtype), b1.astype(jnp.float32),
            w2.astype(compute_dtype), b2.astype(jnp.float32),
            wh.astype(compute_dtype), bh.astype(jnp.float32))


def reference_forward(state, params, compute_dtype=jnp.float32):
    """Plain-JAX reference of the PyTorch forward(); optional bf16 matmul operands."""
    w1, b1, w2, b2, wv, bv, wa, ba = params
    c = lambda t: t.astype(compute_dtype)
    h1 = jnp.maximum(
        jnp.dot(c(state), c(w1), preferred_element_type=jnp.float32) + b1, 0.0)
    h2 = jnp.maximum(
        jnp.dot(c(h1), c(w2), preferred_element_type=jnp.float32) + b2, 0.0)
    V = jnp.dot(c(h2), c(wv), preferred_element_type=jnp.float32) + bv
    A = jnp.dot(c(h2), c(wa), preferred_element_type=jnp.float32) + ba
    return V, A


# TODO(synk): optimizer (Adam), MSELoss and checkpoint save/load are host-side
# training utilities with no kernel equivalent; only forward() is implemented.

if __name__ == "__main__":
    # Small shapes consistent with the module: input_dims=(8,), l1=l2=64,
    # n_actions=4, batch=2.
    B, D, L1, L2, NA = 2, 8, 64, 64, 4

    key = jax.random.PRNGKey(0)
    k_params, k_state, k_state2 = jax.random.split(key, 3)
    raw_params = init_params(k_params, D, L1, L2, NA)
    packed = pack_params(*raw_params)
    state = jax.random.normal(k_state, (B, D), jnp.float32)

    V, A = dueling_forward(state, packed, n_actions=NA)
    jax.block_until_ready((V, A))

    assert V.shape == (B, 1) and A.shape == (B, NA)

    # Same-precision (bf16 matmul operand) reference: should match tightly.
    V_bf, A_bf = reference_forward(state, raw_params, compute_dtype=jnp.bfloat16)
    assert jnp.allclose(V, V_bf, atol=1e-3, rtol=1e-3)
    assert jnp.allclose(A, A_bf, atol=1e-3, rtol=1e-3)

    # Full-f32 reference sanity check (loose: bf16 operand rounding).
    V_f32, A_f32 = reference_forward(state, raw_params)
    assert jnp.allclose(V, V_f32, atol=1e-1, rtol=0.0)
    assert jnp.allclose(A, A_f32, atol=1e-1, rtol=0.0)

    # Exercise the multi-step (>= 2 tiles) grid path with a slightly larger,
    # non-multiple-of-8 batch.
    B2 = 20
    state2 = jax.random.normal(k_state2, (B2, D), jnp.float32)
    V2, A2 = dueling_forward(state2, packed, n_actions=NA)
    jax.block_until_ready((V2, A2))
    V2_bf, A2_bf = reference_forward(state2, raw_params, compute_dtype=jnp.bfloat16)
    assert V2.shape == (B2, 1) and A2.shape == (B2, NA)
    assert jnp.allclose(V2, V2_bf, atol=1e-3, rtol=1e-3)
    assert jnp.allclose(A2, A2_bf, atol=1e-3, rtol=1e-3)

    print("KERNEL_OK")
</pallas_src>

<mosaic_0001>
module attributes {stable_mosaic.version = 11 : i64} {
  func.func @_dueling_kernel(%arg0: i32, %arg1: memref<8x8xf32, #tpu.memory_space<vmem>>, %arg2: memref<8x64xbf16, #tpu.memory_space<vmem>>, %arg3: memref<1x64xf32, #tpu.memory_space<vmem>>, %arg4: memref<64x64xbf16, #tpu.memory_space<vmem>>, %arg5: memref<1x64xf32, #tpu.memory_space<vmem>>, %arg6: memref<64x128xbf16, #tpu.memory_space<vmem>>, %arg7: memref<1x128xf32, #tpu.memory_space<vmem>>, %arg8: memref<8x128xf32, #tpu.memory_space<vmem>>) attributes {dimension_semantics = [#tpu.dimension_semantics<parallel>], iteration_bounds = array<i64: 1>, scalar_prefetch = 0 : i64, scratch_operands = 0 : i64, tpu.core_type = #tpu.core_type<tc>, window_params = [{transform_indices = @transform_0, window_bounds = array<i64: 8, 8>}, {pipeline_mode = #tpu.pipeline_mode<synchronous>, transform_indices = @transform_1, window_bounds = array<i64: 8, 64>}, {pipeline_mode = #tpu.pipeline_mode<synchronous>, transform_indices = @transform_2, window_bounds = array<i64: 1, 64>}, {pipeline_mode = #tpu.pipeline_mode<synchronous>, transform_indices = @transform_3, window_bounds = array<i64: 64, 64>}, {pipeline_mode = #tpu.pipeline_mode<synchronous>, transform_indices = @transform_4, window_bounds = array<i64: 1, 64>}, {pipeline_mode = #tpu.pipeline_mode<synchronous>, transform_indices = @transform_5, window_bounds = array<i64: 64, 128>}, {pipeline_mode = #tpu.pipeline_mode<synchronous>, transform_indices = @transform_6, window_bounds = array<i64: 1, 128>}, {transform_indices = @transform_7, window_bounds = array<i64: 8, 128>}]} {
    %c0 = arith.constant 0 : index
    %c0_0 = arith.constant 0 : index
    %0 = vector.load %arg1[%c0, %c0_0] : memref<8x8xf32, #tpu.memory_space<vmem>>, vector<8x8xf32>
    %1 = arith.truncf %0 : vector<8x8xf32> to vector<8x8xbf16>
    %c0_1 = arith.constant 0 : index
    %c0_2 = arith.constant 0 : index
    %2 = vector.load %arg2[%c0_1, %c0_2] : memref<8x64xbf16, #tpu.memory_space<vmem>>, vector<8x64xbf16>
    %cst = arith.constant dense<0.000000e+00> : vector<8x64xf32>
    %3 = tpu.matmul %1, %2, %cst {dimension_numbers = #tpu.dot_dimension_numbers<[1], [0], [0], [1], [0, 0, 1, 1], [], []>} : vector<8x8xbf16>, vector<8x64xbf16>, vector<8x64xf32> -> vector<8x64xf32>
    %c0_3 = arith.constant 0 : index
    %c0_4 = arith.constant 0 : index
    %4 = vector.load %arg3[%c0_3, %c0_4] : memref<1x64xf32, #tpu.memory_space<vmem>>, vector<1x64xf32>
    %5 = vector.broadcast %4 : vector<1x64xf32> to vector<8x64xf32>
    %6 = arith.addf %3, %5 : vector<8x64xf32>
    %cst_5 = arith.constant 0.000000e+00 : f32
    %7 = vector.broadcast %cst_5 : f32 to vector<8x64xf32>
    %8 = arith.maximumf %6, %7 : vector<8x64xf32>
    %9 = arith.truncf %8 : vector<8x64xf32> to vector<8x64xbf16>
    %c0_6 = arith.constant 0 : index
    %c0_7 = arith.constant 0 : index
    %10 = vector.load %arg4[%c0_6, %c0_7] : memref<64x64xbf16, #tpu.memory_space<vmem>>, vector<64x64xbf16>
    %cst_8 = arith.constant dense<0.000000e+00> : vector<8x64xf32>
    %11 = tpu.matmul %9, %10, %cst_8 {dimension_numbers = #tpu.dot_dimension_numbers<[1], [0], [0], [1], [0, 0, 1, 1], [], []>} : vector<8x64xbf16>, vector<64x64xbf16>, vector<8x64xf32> -> vector<8x64xf32>
    %c0_9 = arith.constant 0 : index
    %c0_10 = arith.constant 0 : index
    %12 = vector.load %arg5[%c0_9, %c0_10] : memref<1x64xf32, #tpu.memory_space<vmem>>, vector<1x64xf32>
    %13 = vector.broadcast %12 : vector<1x64xf32> to vector<8x64xf32>
    %14 = arith.addf %11, %13 : vector<8x64xf32>
    %cst_11 = arith.constant 0.000000e+00 : f32
    %15 = vector.broadcast %cst_11 : f32 to vector<8x64xf32>
    %16 = arith.maximumf %14, %15 : vector<8x64xf32>
    %17 = arith.truncf %16 : vector<8x64xf32> to vector<8x64xbf16>
    %c0_12 = arith.constant 0 : index
    %c0_13 = arith.constant 0 : index
    %18 = vector.load %arg6[%c0_12, %c0_13] : memref<64x128xbf16, #tpu.memory_space<vmem>>, vector<64x128xbf16>
    %cst_14 = arith.constant dense<0.000000e+00> : vector<8x128xf32>
    %19 = tpu.matmul %17, %18, %cst_14 {dimension_numbers = #tpu.dot_dimension_numbers<[1], [0], [0], [1], [0, 0, 1, 1], [], []>} : vector<8x64xbf16>, vector<64x128xbf16>, vector<8x128xf32> -> vector<8x128xf32>
    %c0_15 = arith.constant 0 : index
    %c0_16 = arith.constant 0 : index
    %20 = vector.load %arg7[%c0_15, %c0_16] : memref<1x128xf32, #tpu.memory_space<vmem>>, vector<1x128xf32>
    %21 = vector.broadcast %20 : vector<1x128xf32> to vector<8x128xf32>
    %22 = arith.addf %19, %21 : vector<8x128xf32>
    %c0_17 = arith.constant 0 : index
    %c0_18 = arith.constant 0 : index
    %23 = vector.load %arg8[%c0_17, %c0_18] : memref<8x128xf32, #tpu.memory_space<vmem>>, vector<8x128xf32>
    tpu.vector_store %arg8[%c0_17, %c0_18], %22 {strides = array<i32>} : memref<8x128xf32, #tpu.memory_space<vmem>>, vector<8x128xf32>,
    return
  }
  func.func @transform_0(%arg0: i32) -> (i32, i32) {
    %c0_i32 = arith.constant 0 : i32
    %c0_i32_0 = arith.constant 0 : i32
    return %arg0, %c0_i32 : i32, i32
  }
  func.func @transform_1(%arg0: i32) -> (i32, i32) {
    %c0_i32 = arith.constant 0 : i32
    %c0_i32_0 = arith.constant 0 : i32
    %c0_i32_1 = arith.constant 0 : i32
    return %c0_i32, %c0_i32_0 : i32, i32
  }
  func.func @transform_2(%arg0: i32) -> (i32, i32) {
    %c0_i32 = arith.constant 0 : i32
    %c0_i32_0 = arith.constant 0 : i32
    %c0_i32_1 = arith.constant 0 : i32
    return %c0_i32, %c0_i32_0 : i32, i32
  }
  func.func @transform_3(%arg0: i32) -> (i32, i32) {
    %c0_i32 = arith.constant 0 : i32
    %c0_i32_0 = arith.constant 0 : i32
    %c0_i32_1 = arith.constant 0 : i32
    return %c0_i32, %c0_i32_0 : i32, i32
  }
  func.func @transform_4(%arg0: i32) -> (i32, i32) {
    %c0_i32 = arith.constant 0 : i32
    %c0_i32_0 = arith.constant 0 : i32
    %c0_i32_1 = arith.constant 0 : i32
    return %c0_i32, %c0_i32_0 : i32, i32
  }
  func.func @transform_5(%arg0: i32) -> (i32, i32) {
    %c0_i32 = arith.constant 0 : i32
    %c0_i32_0 = arith.constant 0 : i32
    %c0_i32_1 = arith.constant 0 : i32
    return %c0_i32, %c0_i32_0 : i32, i32
  }
  func.func @transform_6(%arg0: i32) -> (i32, i32) {
    %c0_i32 = arith.constant 0 : i32
    %c0_i32_0 = arith.constant 0 : i32
    %c0_i32_1 = arith.constant 0 : i32
    return %c0_i32, %c0_i32_0 : i32, i32
  }
  func.func @transform_7(%arg0: i32) -> (i32, i32) {
    %c0_i32 = arith.constant 0 : i32
    %c0_i32_0 = arith.constant 0 : i32
    return %arg0, %c0_i32 : i32, i32
  }
}

</mosaic_0001>

<llo_original>
// kernel: dueling_forward.1
$region0: #{dueling_forward.1}
  #allocation0 [shape = 'u32[]', space=smem, size = 0x4, offset = 0x4, fixed_abs, tag = 'smem constant byte address 0x4 - core index']
  #allocation1 [shape = 'u32[144,128]{1,0:T(1,128)}', space=vmem, size = 0x12000, scoped, tag = 'internal scratch']
  %s0 = inlined_call_operand.vmem [shape: f32[8,8], index: 0, kind: input, shape index: {}]
  %s1 = inlined_call_operand.vmem [shape: bf16[8,64], index: 1, kind: input, shape index: {}]
  %s2 = inlined_call_operand.vmem [shape: f32[1,64], index: 2, kind: input, shape index: {}]
  %s3 = inlined_call_operand.hbm [shape: bf16[64,64], index: 3, kind: input, shape index: {}]
  %s4 = inlined_call_operand.vmem [shape: f32[1,64], index: 4, kind: input, shape index: {}]
  %s5 = inlined_call_operand.hbm [shape: bf16[64,128], index: 5, kind: input, shape index: {}]
  %s6 = inlined_call_operand.vmem [shape: f32[1,128], index: 6, kind: input, shape index: {}]
  %s7 = inlined_call_operand.vmem [shape: f32[8,128], index: 7, kind: output, shape index: {}]
  %s8 = sld [smem:[#allocation0]]
  $region46: #{dueling_forward.1} parent=0
    _
  %s10 = ssub.s32 1, %s8
  %s11 = scalar_select 0, %s10, %s8
  $region1: #{dueling_forward.1} parent=0
    #allocation2 [shape = 'u8[16384]{0}', space=vmem, size = 0x4000, scoped, tag = 'input window, operand 3, single buffered']
    #allocation3 [shape = 's32[1]{0}', space=sflag, size = 0x4, scoped, tag = 'scoped memory for dueling_forward.1']
    #allocation4 [shape = 'u8[16384]{0}', space=vmem, size = 0x4000, scoped, tag = 'input window, operand 5, single buffered']
    #allocation5 [shape = 's32[1]{0}', space=sflag, size = 0x4, scoped, tag = 'scoped memory for dueling_forward.1']
    %12 = vsyncpa [#allocation3], 0
    %13 = vsyncpa [#allocation5], 0
    // Predicated region
    $region2: #{dueling_forward.1} parent=1 // pred_check
      _
    $region3: #{dueling_forward.1} parent=1 // pred_check_branch
      %15 = sbr.rel (0) target = $region5
    $region4: #{dueling_forward.1} parent=1 // pred_region
      _
    $region5: #{dueling_forward.1} parent=1 // pred_fallthru
      _
    // Predicated region
    $region6: #{dueling_forward.1} parent=1 // pred_check
      _
    $region7: #{dueling_forward.1} parent=1 // pred_check_branch
      %17 = sbr.rel (0) target = $region9
    $region8: #{dueling_forward.1} parent=1 // pred_region
      _
    $region9: #{dueling_forward.1} parent=1 // pred_fallthru
      _
    // Predicated region
    $region10: #{dueling_forward.1} parent=1 // pred_check
      _
    $region11: #{dueling_forward.1} parent=1 // pred_check_branch
      %19 = sbr.rel (0) target = $region13
    $region12: #{dueling_forward.1} parent=1 // pred_region
      _
    $region13: #{dueling_forward.1} parent=1 // pred_fallthru
      _
    // Predicated region
    $region14: #{dueling_forward.1} parent=1 // pred_check
      _
    $region15: #{dueling_forward.1} parent=1 // pred_check_branch
      %21 = sbr.rel (0) target = $region17
    $region16: #{dueling_forward.1} parent=1 // pred_region
      %s23 = ssub.s32 512, 512
      %24 = vsyncadd [#allocation3], %s23
      %s25 = sshll.u32 [#allocation2], 4
      %s26 = int_to_ptr.vmem [resolvable:$true] %s25
      %31 = dma.hbm_to_vmem [thread:$0]  %s3, 512, %s26, [#allocation3], 64, 64, 4
    $region17: #{dueling_forward.1} parent=1 // pred_fallthru
      _
    // Predicated region
    $region18: #{dueling_forward.1} parent=1 // pred_check
      _
    $region19: #{dueling_forward.1} parent=1 // pred_check_branch
      %33 = sbr.rel (0) target = $region21
    $region20: #{dueling_forward.1} parent=1 // pred_region
      _
    $region21: #{dueling_forward.1} parent=1 // pred_fallthru
      _
    // Predicated region
    $region22: #{dueling_forward.1} parent=1 // pred_check
      _
    $region23: #{dueling_forward.1} parent=1 // pred_check_branch
      %35 = sbr.rel (0) target = $region25
    $region24: #{dueling_forward.1} parent=1 // pred_region
      %s37 = ssub.s32 512, 512
      %38 = vsyncadd [#allocation5], %s37
      %s39 = sshll.u32 [#allocation4], 4
      %s40 = int_to_ptr.vmem [resolvable:$true] %s39
      %45 = dma.hbm_to_vmem [thread:$0]  %s5, 512, %s40, [#allocation5], 64, 64, 4
    $region25: #{dueling_forward.1} parent=1 // pred_fallthru
      _
    // Predicated region
    $region26: #{dueling_forward.1} parent=1 // pred_check
      _
    $region27: #{dueling_forward.1} parent=1 // pred_check_branch
      %47 = sbr.rel (0) target = $region29
    $region28: #{dueling_forward.1} parent=1 // pred_region
      _
    $region29: #{dueling_forward.1} parent=1 // pred_fallthru
      _
    // Predicated region
    $region30: #{dueling_forward.1} parent=1 // pred_check
      _
    $region31: #{dueling_forward.1} parent=1 // pred_check_branch
      %49 = sbr.rel (0) target = $region33
    $region32: #{dueling_forward.1} parent=1 // pred_region
      %50 = dma.done [#allocation3], 512
    $region33: #{dueling_forward.1} parent=1 // pred_fallthru
      _
    // Predicated region
    $region34: #{dueling_forward.1} parent=1 // pred_check
      _
    $region35: #{dueling_forward.1} parent=1 // pred_check_branch
      %52 = sbr.rel (0) target = $region37
    $region36: #{dueling_forward.1} parent=1 // pred_region
      %53 = dma.done [#allocation5], 512
    $region37: #{dueling_forward.1} parent=1 // pred_fallthru
      _
    %v55 = vld [vmem:[%s0] sm:$0xff]
    %v56 = vpack.c.bf16 %v55, %v55
    %v57 = vld [vmem:[%s1] sm:$0xf]
    %v58 = vld [vmem:[%s2] sm:$0x1]
    %v60 = vlaneseq
    %v61 = vshrl.u32 %v60, 7
    %v62 = vsub.s32 0, %v61
    %v63 = vrot.slane %v58, %v62
    %vm65 = vcmask 64512
    %v67 = vsel %vm65, %v56, 0
    %vm69 = vcmask 1043456
    %v71 = vsel %vm69, %v57, 0
    %73 = vmatprep.subr.bf16.mxu0 0
    %74 = vmatpush1.bf16.msra.mxu0 %v71
    %75 = vmatprep.subr.bf16.mxu0 0
    %76 = vmatpush1.bf16.msra.mxu0 0
    %77 = vmatprep.subr.bf16.mxu0 0
    %78 = vmatpush1.bf16.msra.mxu0 0
    %79 = vmatprep.subr.bf16.mxu0 0
    %80 = vmatpush1.bf16.msra.mxu0 0
    %81 = vmatprep.subr.bf16.mxu0 0
    %82 = vmatpush1.bf16.msra.mxu0 0
    %83 = vmatprep.subr.bf16.mxu0 0
    %84 = vmatpush1.bf16.msra.mxu0 0
    %85 = vmatprep.subr.bf16.mxu0 0
    %86 = vmatpush1.bf16.msra.mxu0 0
    %87 = vmatprep.subr.bf16.mxu0 0
    %88 = vmatpush1.bf16.msra.mxu0 0
    %89 = vmatprep.subr.bf16.mxu0 0
    %90 = vmatpush1.bf16.msra.mxu0 0
    %91 = vmatprep.subr.bf16.mxu0 0
    %92 = vmatpush1.bf16.msra.mxu0 0
    %93 = vmatprep.subr.bf16.mxu0 0
    %94 = vmatpush1.bf16.msra.mxu0 0
    %95 = vmatprep.subr.bf16.mxu0 0
    %96 = vmatpush1.bf16.msra.mxu0 0
    %97 = vmatprep.subr.bf16.mxu0 0
    %98 = vmatpush1.bf16.msra.mxu0 0
    %99 = vmatprep.subr.bf16.mxu0 0
    %100 = vmatpush1.bf16.msra.mxu0 0
    %101 = vmatprep.subr.bf16.mxu0 0
    %102 = vmatpush1.bf16.msra.mxu0 0
    %103 = vmatprep.subr.bf16.mxu0 0
    %104 = vmatpush1.bf16.msra.mxu0 0
    %105 = vmatprep.mubr.bf16.mxu0 0
    %106 = vmatmul.mubr.bf16.gmra.mrb[0].mxu0 %v67
    %v107 = vpop.f32.mrb[0].mxu0
    %v108 = vadd.f32 %v63, %v107
    %v109 = vpop.f32.mrb[0].mxu0
    %v110 = vpop.f32.mrb[0].mxu0
    %v111 = vpop.f32.mrb[0].mxu0
    %112 = vdwg.mxu0
    %v113 = vmax.f32 %v108, 0.0
    %v114 = vpack.c.bf16 %v113, %v113
    %v115 = vld [vmem:[#allocation2] sm:$0xf]
    %v116 = vld [vmem:[#allocation2 + $0x4] sm:$0xf]
    %v117 = vld [vmem:[#allocation2 + $0x8] sm:$0xf]
    %v118 = vld [vmem:[#allocation2 + $0xc] sm:$0xf]
    %v119 = vld [vmem:[#allocation2 + $0x10] sm:$0xf]
    %v120 = vld [vmem:[#allocation2 + $0x14] sm:$0xf]
    %v121 = vld [vmem:[#allocation2 + $0x18] sm:$0xf]
    %v122 = vld [vmem:[#allocation2 + $0x1c] sm:$0xf]
    %v123 = vld [vmem:[%s4] sm:$0x1]
    %v125 = vlaneseq
    %v126 = vshrl.u32 %v125, 7
    %v127 = vsub.s32 0, %v126
    %v128 = vrot.slane %v123, %v127
    %v138 = vunpack.c.l.b16 %v115
    %v139 = vunpack.c.l.b16 %v116
    %v140 = vunpack.c.l.b16 %v117
    %v141 = vunpack.c.l.b16 %v118
    %v142 = vunpack.c.l.b16 %v119
    %v143 = vunpack.c.l.b16 %v120
    %v144 = vunpack.c.l.b16 %v121
    %v145 = vunpack.c.l.b16 %v122
    %v146 = vpack.c.b16 %v139, %v138
    %v147 = vpack.c.b16 %v141, %v140
    %v148 = vpack.c.b16 %v143, %v142
    %v149 = vpack.c.b16 %v145, %v144
    %vm154 = vcmask 523264
    %v156 = vsel %vm154, %v114, 0
    %158 = vmatprep.subr.bf16.mxu0 0
    %159 = vmatpush1.bf16.msra.mxu0 %v146
    %160 = vmatprep.subr.bf16.mxu0 0
    %161 = vmatpush1.bf16.msra.mxu0 %v147
    %162 = vmatprep.subr.bf16.mxu0 0
    %163 = vmatpush1.bf16.msra.mxu0 %v148
    %164 = vmatprep.subr.bf16.mxu0 0
    %165 = vmatpush1.bf16.msra.mxu0 %v149
    %166 = vmatprep.subr.bf16.mxu0 0
    %167 = vmatpush1.bf16.msra.mxu0 0
    %168 = vmatprep.subr.bf16.mxu0 0
    %169 = vmatpush1.bf16.msra.mxu0 0
    %170 = vmatprep.subr.bf16.mxu0 0
    %171 = vmatpush1.bf16.msra.mxu0 0
    %172 = vmatprep.subr.bf16.mxu0 0
    %173 = vmatpush1.bf16.msra.mxu0 0
    %174 = vmatprep.subr.bf16.mxu0 0
    %175 = vmatpush1.bf16.msra.mxu0 0
    %176 = vmatprep.subr.bf16.mxu0 0
    %177 = vmatpush1.bf16.msra.mxu0 0
    %178 = vmatprep.subr.bf16.mxu0 0
    %179 = vmatpush1.bf16.msra.mxu0 0
    %180 = vmatprep.subr.bf16.mxu0 0
    %181 = vmatpush1.bf16.msra.mxu0 0
    %182 = vmatprep.subr.bf16.mxu0 0
    %183 = vmatpush1.bf16.msra.mxu0 0
    %184 = vmatprep.subr.bf16.mxu0 0
    %185 = vmatpush1.bf16.msra.mxu0 0
    %186 = vmatprep.subr.bf16.mxu0 0
    %187 = vmatpush1.bf16.msra.mxu0 0
    %188 = vmatprep.subr.bf16.mxu0 0
    %189 = vmatpush1.bf16.msra.mxu0 0
    %190 = vmatprep.mubr.bf16.mxu0 0
    %191 = vmatmul.mubr.bf16.gmra.mrb[0].mxu0 %v156
    %v192 = vpop.f32.mrb[0].mxu0
    %v193 = vadd.f32 %v128, %v192
    %v194 = vpop.f32.mrb[0].mxu0
    %v195 = vpop.f32.mrb[0].mxu0
    %v196 = vpop.f32.mrb[0].mxu0
    %197 = vdwg.mxu0
    %v198 = vmax.f32 %v193, 0.0
    %v199 = vpack.c.bf16 %v198, %v198
    %v200 = vld [vmem:[#allocation4] sm:$0xf]
    %v201 = vld [vmem:[#allocation4 + $0x4] sm:$0xf]
    %v202 = vld [vmem:[#allocation4 + $0x8] sm:$0xf]
    %v203 = vld [vmem:[#allocation4 + $0xc] sm:$0xf]
    %v204 = vld [vmem:[#allocation4 + $0x10] sm:$0xf]
    %v205 = vld [vmem:[#allocation4 + $0x14] sm:$0xf]
    %v206 = vld [vmem:[#allocation4 + $0x18] sm:$0xf]
    %v207 = vld [vmem:[#allocation4 + $0x1c] sm:$0xf]
    %v208 = vld [vmem:[%s6] sm:$0x1]
    %v210 = vlaneseq
    %v211 = vshrl.u32 %v210, 7
    %v212 = vsub.s32 0, %v211
    %v213 = vrot.slane %v208, %v212
    %v223 = vunpack.c.l.b16 %v200
    %v224 = vunpack.c.l.b16 %v201
    %v225 = vunpack.c.l.b16 %v202
    %v226 = vunpack.c.l.b16 %v203
    %v227 = vunpack.c.l.b16 %v204
    %v228 = vunpack.c.l.b16 %v205
    %v229 = vunpack.c.l.b16 %v206
    %v230 = vunpack.c.l.b16 %v207
    %v231 = vpack.c.b16 %v224, %v223
    %v232 = vpack.c.b16 %v226, %v225
    %v233 = vpack.c.b16 %v228, %v227
    %v234 = vpack.c.b16 %v230, %v229
    %v240 = vsel %vm154, %v199, 0
    %242 = vmatprep.subr.bf16.mxu0 0
    %243 = vmatpush1.bf16.msra.mxu0 %v231
    %244 = vmatprep.subr.bf16.mxu0 0
    %245 = vmatpush1.bf16.msra.mxu0 %v232
    %246 = vmatprep.subr.bf16.mxu0 0
    %247 = vmatpush1.bf16.msra.mxu0 %v233
    %248 = vmatprep.subr.bf16.mxu0 0
    %249 = vmatpush1.bf16.msra.mxu0 %v234
    %250 = vmatprep.subr.bf16.mxu0 0
    %251 = vmatpush1.bf16.msra.mxu0 0
    %252 = vmatprep.subr.bf16.mxu0 0
    %253 = vmatpush1.bf16.msra.mxu0 0
    %254 = vmatprep.subr.bf16.mxu0 0
    %255 = vmatpush1.bf16.msra.mxu0 0
    %256 = vmatprep.subr.bf16.mxu0 0
    %257 = vmatpush1.bf16.msra.mxu0 0
    %258 = vmatprep.subr.bf16.mxu0 0
    %259 = vmatpush1.bf16.msra.mxu0 0
    %260 = vmatprep.subr.bf16.mxu0 0
    %261 = vmatpush1.bf16.msra.mxu0 0
    %262 = vmatprep.subr.bf16.mxu0 0
    %263 = vmatpush1.bf16.msra.mxu0 0
    %264 = vmatprep.subr.bf16.mxu0 0
    %265 = vmatpush1.bf16.msra.mxu0 0
    %266 = vmatprep.subr.bf16.mxu0 0
    %267 = vmatpush1.bf16.msra.mxu0 0
    %268 = vmatprep.subr.bf16.mxu0 0
    %269 = vmatpush1.bf16.msra.mxu0 0
    %270 = vmatprep.subr.bf16.mxu0 0
    %271 = vmatpush1.bf16.msra.mxu0 0
    %272 = vmatprep.subr.bf16.mxu0 0
    %273 = vmatpush1.bf16.msra.mxu0 0
    %274 = vmatprep.mubr.bf16.mxu0 0
    %275 = vmatmul.mubr.bf16.gmra.mrb[0].mxu0 %v240
    %v276 = vpop.f32.mrb[0].mxu0
    %v277 = vadd.f32 %v213, %v276
    %v278 = vpop.f32.mrb[0].mxu0
    %v279 = vpop.f32.mrb[0].mxu0
    %v280 = vpop.f32.mrb[0].mxu0
    %281 = vdwg.mxu0
    %282 = vst [vmem:[%s7] sm:$0xff] %v277
    // Predicated region
    $region38: #{dueling_forward.1} parent=1 // pred_check
      _
    $region39: #{dueling_forward.1} parent=1 // pred_check_branch
      %284 = sbr.rel (0) target = $region41
    $region40: #{dueling_forward.1} parent=1 // pred_region
      _
    $region41: #{dueling_forward.1} parent=1 // pred_fallthru
      _
    // Predicated region
    $region42: #{dueling_forward.1} parent=1 // pred_check
      _
    $region43: #{dueling_forward.1} parent=1 // pred_check_branch
      %286 = sbr.rel (0) target = $region45
    $region44: #{dueling_forward.1} parent=1 // pred_region
      _
    $region45: #{dueling_forward.1} parent=1 // pred_fallthru
      _
    %287 = vsyncpa [#allocation3], 1
    %288 = vsyncpa [#allocation5], 1

</llo_original>
